<compile_context>
chip_gen: v6e
topology: v6e:2x2x1
jax: 0.10.0
libtpu: 0.0.40
codegen_flags: <defaults>
</compile_context>

<pallas_src>
import functools

import jax
import jax.numpy as jnp
import numpy as np
from jax.experimental import pallas as pl
from jax.experimental.pallas import tpu as pltpu


def _single_layer_kernel(x_ref, w_ref, out_ref, *, height, width):
    """Fused relu -> 3x3 conv (pad=1, no bias) -> channel concat, NC(HW) layout.

    x_ref  : (BN, Cin, H*W)       original input (pre-ReLU), spatial flattened on lanes
    w_ref  : (9, Cout, Cin)       conv weights, taps flattened row-major (k = dy*3+dx)
    out_ref: (BN, Cin+Cout, H*W)  out[:, :Cin] = x ; out[:, Cin:] = conv1(relu(x))
    """
    bn, cin, hw = x_ref.shape
    cout = w_ref.shape[1]

    x_all = x_ref[...]                       # one VMEM read of the whole block
    out_ref[:, :cin, :] = x_all              # fused torch.cat((x, out), 1): x part
    xr_all = jnp.maximum(x_all, 0.0)         # ReLU on the hot path (relu(0)==0)

    # Boundary-validity masks replace zero padding. Hoisted out of all loops.
    pos = jax.lax.broadcasted_iota(jnp.int32, (cin, hw), 1)
    col = pos % width
    row_ok = [pos >= width, None, pos < (height - 1) * width]   # dy = 0, 1, 2
    col_ok = [col > 0, None, col < (width - 1)]                 # dx = 0, 1, 2

    # Hoist the 9 (Cout, Cin) weight taps (reused for every image in the block).
    w_taps = [w_ref[k] for k in range(9)]

    for b in range(bn):
        xr = xr_all[b]                       # (Cin, H*W), lane-dense
        acc = jnp.zeros((cout, hw), dtype=jnp.float32)   # (8, 256) -> ~2 vregs
        for dy in range(3):
            for dx in range(3):
                s = (dy - 1) * width + (dx - 1)          # flat source offset of tap
                # Cyclic lane rotate (XLU) so rolled[p] == xr[p + s]; boundary
                # positions are zeroed by the mask below (== zero padding).
                t = xr if s == 0 else pltpu.roll(xr, shift=(-s) % hw, axis=1)
                rm, cm = row_ok[dy], col_ok[dx]
                if rm is not None and cm is not None:
                    m = jnp.logical_and(rm, cm)
                elif rm is not None:
                    m = rm
                else:
                    m = cm
                if m is not None:
                    t = jnp.where(m, t, 0.0)
                # (Cout, Cin) @ (Cin, H*W) -> (Cout, H*W): lane-dense MXU matmul.
                acc = acc + jnp.dot(w_taps[dy * 3 + dx], t,
                                    preferred_element_type=jnp.float32)
        out_ref[b, cin:cin + cout, :] = acc.astype(out_ref.dtype)


def _pick_block_n(n, cin, cout, hw):
    """Images per grid step: amortize per-step overhead, but keep >= 2 grid steps
    (when n >= 2) so a 2-TensorCore part (v7x) can split the parallel axis."""
    bytes_per_img = (2 * cin + cout) * hw * 4        # input + output block rows, f32
    budget = 8 * 1024 * 1024                         # conservative per-block VMEM budget
    cap = max(1, budget // max(1, 2 * bytes_per_img))  # 2x for double buffering
    best = 1
    for bn in range(1, n + 1):
        if n % bn or bn > cap:
            continue
        if n // bn >= 2 or n == 1:
            best = bn
    return best


def single_layer_forward(x_nchw, weight_oihw, use_dropout=False):
    """x_nchw: (N, Cin, H, W) float32; weight_oihw: (Cout, Cin, 3, 3)."""
    # TODO(synk): training-mode dropout (p=0.2) not implemented; eval-mode dropout
    # is the identity, which is what this computes.
    del use_dropout

    N, cin, H, W = x_nchw.shape
    cout = weight_oihw.shape[0]
    hw = H * W

    # Free, layout-preserving reshape (spatial dims are contiguous in NCHW).
    x_flat = x_nchw.reshape(N, cin, hw)
    # (Cout,Cin,3,3) -> (3,3,Cout,Cin) -> (9,Cout,Cin); tiny, done once by XLA.
    w = jnp.transpose(weight_oihw, (2, 3, 0, 1)).reshape(9, cout, cin)

    block_n = _pick_block_n(N, cin, cout, hw)
    grid = (N // block_n,)

    kernel = functools.partial(_single_layer_kernel, height=H, width=W)

    out_flat = pl.pallas_call(
        kernel,
        out_shape=jax.ShapeDtypeStruct((N, cin + cout, hw), x_nchw.dtype),
        grid_spec=pltpu.PrefetchScalarGridSpec(
            num_scalar_prefetch=0,
            grid=grid,
            in_specs=[
                pl.BlockSpec((block_n, cin, hw), lambda n: (n, 0, 0)),
                pl.BlockSpec((9, cout, cin), lambda n: (0, 0, 0)),
            ],
            out_specs=pl.BlockSpec((block_n, cin + cout, hw), lambda n: (n, 0, 0)),
        ),
        compiler_params=pltpu.CompilerParams(
            dimension_semantics=("parallel",),
            vmem_limit_bytes=32 * 1024 * 1024,
        ),
    )(x_flat, w)

    return out_flat.reshape(N, cin + cout, H, W)


def _reference_forward(x_nchw, weight_oihw):
    """Pure-JAX reference (lax conv) for correctness check."""
    relu_x = jnp.maximum(x_nchw, 0.0)
    conv = jax.lax.conv_general_dilated(
        relu_x, weight_oihw,
        window_strides=(1, 1), padding=((1, 1), (1, 1)),
        dimension_numbers=("NCHW", "OIHW", "NCHW"))
    return jnp.concatenate([x_nchw, conv], axis=1)


if __name__ == "__main__":
    # Small shapes: batch=2, nChannels=4, growthRate=8, spatial=16.
    N, nChannels, growthRate, H, W = 2, 4, 8, 16, 16

    key = jax.random.PRNGKey(0)
    kx, kw = jax.random.split(key)
    x = jax.random.normal(kx, (N, nChannels, H, W), dtype=jnp.float32)

    # Deterministic conv weight init (kaiming-uniform-ish scale), no bias.
    fan_in = nChannels * 3 * 3
    bound = 1.0 / np.sqrt(fan_in)
    weight = jax.random.uniform(
        kw, (growthRate, nChannels, 3, 3),
        minval=-bound, maxval=bound, dtype=jnp.float32)

    out = jax.block_until_ready(single_layer_forward(x, weight, use_dropout=False))
    ref = jax.block_until_ready(_reference_forward(x, weight))

    assert out.shape == (N, nChannels + growthRate, H, W), out.shape
    assert np.allclose(np.asarray(out), np.asarray(ref), atol=1e-5, rtol=1e-5)

    print("KERNEL_OK")
</pallas_src>

<mosaic_0001>
module attributes {stable_mosaic.version = 11 : i64} {
  func.func @_single_layer_kernel(%arg0: i32, %arg1: memref<1x4x256xf32, #tpu.memory_space<vmem>>, %arg2: memref<9x8x4xf32, #tpu.memory_space<vmem>>, %arg3: memref<1x12x256xf32, #tpu.memory_space<vmem>>) attributes {dimension_semantics = [#tpu.dimension_semantics<parallel>], iteration_bounds = array<i64: 2>, scalar_prefetch = 0 : i64, scratch_operands = 0 : i64, tpu.core_type = #tpu.core_type<tc>, window_params = [{transform_indices = @transform_0, window_bounds = array<i64: 1, 4, 256>}, {pipeline_mode = #tpu.pipeline_mode<synchronous>, transform_indices = @transform_1, window_bounds = array<i64: 9, 8, 4>}, {transform_indices = @transform_2, window_bounds = array<i64: 1, 12, 256>}]} {
    %c0 = arith.constant 0 : index
    %c0_0 = arith.constant 0 : index
    %c0_1 = arith.constant 0 : index
    %0 = vector.load %arg1[%c0, %c0_0, %c0_1] : memref<1x4x256xf32, #tpu.memory_space<vmem>>, vector<1x4x256xf32>
    %c0_2 = arith.constant 0 : index
    %c0_3 = arith.constant 0 : index
    %c0_4 = arith.constant 0 : index
    %1 = vector.load %arg3[%c0_2, %c0_3, %c0_4] : memref<1x12x256xf32, #tpu.memory_space<vmem>>, vector<1x4x256xf32>
    tpu.vector_store %arg3[%c0_2, %c0_3, %c0_4], %0 {strides = array<i32>} : memref<1x12x256xf32, #tpu.memory_space<vmem>>, vector<1x4x256xf32>,
    %cst = arith.constant 0.000000e+00 : f32
    %2 = vector.broadcast %cst : f32 to vector<1x4x256xf32>
    %3 = arith.maximumf %0, %2 : vector<1x4x256xf32>
    %4 = tpu.iota {dimensions = array<i32: 1>} : vector<4x256xi32>
    %c16_i32 = arith.constant 16 : i32
    %c0_i32 = arith.constant 0 : i32
    %5 = arith.cmpi eq, %c16_i32, %c0_i32 : i32
    %c1_i32 = arith.constant 1 : i32
    %6 = arith.select %5, %c1_i32, %c16_i32 : i32
    %7 = vector.broadcast %6 : i32 to vector<4x256xi32>
    %8 = arith.remsi %4, %7 : vector<4x256xi32>
    %c0_i32_5 = arith.constant 0 : i32
    %9 = vector.broadcast %c0_i32_5 : i32 to vector<4x256xi32>
    %10 = arith.cmpi ne, %8, %9 : vector<4x256xi32>
    %c0_i32_6 = arith.constant 0 : i32
    %11 = vector.broadcast %c0_i32_6 : i32 to vector<4x256xi32>
    %12 = arith.cmpi slt, %8, %11 : vector<4x256xi32>
    %c0_i32_7 = arith.constant 0 : i32
    %13 = arith.cmpi slt, %6, %c0_i32_7 : i32
    %14 = vector.broadcast %13 : i1 to vector<4x256xi1>
    %15 = vector.broadcast %14 : vector<4x256xi1> to vector<4x256xi1>
    %16 = arith.xori %12, %15 : vector<4x256xi1>
    %17 = arith.andi %16, %10 : vector<4x256xi1>
    %18 = vector.broadcast %6 : i32 to vector<4x256xi32>
    %19 = arith.addi %8, %18 : vector<4x256xi32>
    %20 = arith.select %17, %19, %8 : vector<4x256xi1>, vector<4x256xi32>
    %c16_i32_8 = arith.constant 16 : i32
    %21 = vector.broadcast %c16_i32_8 : i32 to vector<4x256xi32>
    %22 = arith.cmpi sge, %4, %21 : vector<4x256xi32>
    %c240_i32 = arith.constant 240 : i32
    %23 = vector.broadcast %c240_i32 : i32 to vector<4x256xi32>
    %24 = arith.cmpi slt, %4, %23 : vector<4x256xi32>
    %c0_i32_9 = arith.constant 0 : i32
    %25 = vector.broadcast %c0_i32_9 : i32 to vector<4x256xi32>
    %26 = arith.cmpi sgt, %20, %25 : vector<4x256xi32>
    %c15_i32 = arith.constant 15 : i32
    %27 = vector.broadcast %c15_i32 : i32 to vector<4x256xi32>
    %28 = arith.cmpi slt, %20, %27 : vector<4x256xi32>
    %c0_10 = arith.constant 0 : index
    %c0_11 = arith.constant 0 : index
    %c0_12 = arith.constant 0 : index
    %29 = vector.load %arg2[%c0_10, %c0_11, %c0_12] : memref<9x8x4xf32, #tpu.memory_space<vmem>>, vector<1x8x4xf32>
    %30 = vector.shape_cast %29 : vector<1x8x4xf32> to vector<8x4xf32>
    %c1 = arith.constant 1 : index
    %c0_13 = arith.constant 0 : index
    %c0_14 = arith.constant 0 : index
    %31 = vector.load %arg2[%c1, %c0_13, %c0_14] : memref<9x8x4xf32, #tpu.memory_space<vmem>>, vector<1x8x4xf32>
    %32 = vector.shape_cast %31 : vector<1x8x4xf32> to vector<8x4xf32>
    %c2 = arith.constant 2 : index
    %c0_15 = arith.constant 0 : index
    %c0_16 = arith.constant 0 : index
    %33 = vector.load %arg2[%c2, %c0_15, %c0_16] : memref<9x8x4xf32, #tpu.memory_space<vmem>>, vector<1x8x4xf32>
    %34 = vector.shape_cast %33 : vector<1x8x4xf32> to vector<8x4xf32>
    %c3 = arith.constant 3 : index
    %c0_17 = arith.constant 0 : index
    %c0_18 = arith.constant 0 : index
    %35 = vector.load %arg2[%c3, %c0_17, %c0_18] : memref<9x8x4xf32, #tpu.memory_space<vmem>>, vector<1x8x4xf32>
    %36 = vector.shape_cast %35 : vector<1x8x4xf32> to vector<8x4xf32>
    %c4 = arith.constant 4 : index
    %c0_19 = arith.constant 0 : index
    %c0_20 = arith.constant 0 : index
    %37 = vector.load %arg2[%c4, %c0_19, %c0_20] : memref<9x8x4xf32, #tpu.memory_space<vmem>>, vector<1x8x4xf32>
    %38 = vector.shape_cast %37 : vector<1x8x4xf32> to vector<8x4xf32>
    %c5 = arith.constant 5 : index
    %c0_21 = arith.constant 0 : index
    %c0_22 = arith.constant 0 : index
    %39 = vector.load %arg2[%c5, %c0_21, %c0_22] : memref<9x8x4xf32, #tpu.memory_space<vmem>>, vector<1x8x4xf32>
    %40 = vector.shape_cast %39 : vector<1x8x4xf32> to vector<8x4xf32>
    %c6 = arith.constant 6 : index
    %c0_23 = arith.constant 0 : index
    %c0_24 = arith.constant 0 : index
    %41 = vector.load %arg2[%c6, %c0_23, %c0_24] : memref<9x8x4xf32, #tpu.memory_space<vmem>>, vector<1x8x4xf32>
    %42 = vector.shape_cast %41 : vector<1x8x4xf32> to vector<8x4xf32>
    %c7 = arith.constant 7 : index
    %c0_25 = arith.constant 0 : index
    %c0_26 = arith.constant 0 : index
    %43 = vector.load %arg2[%c7, %c0_25, %c0_26] : memref<9x8x4xf32, #tpu.memory_space<vmem>>, vector<1x8x4xf32>
    %44 = vector.shape_cast %43 : vector<1x8x4xf32> to vector<8x4xf32>
    %c8 = arith.constant 8 : index
    %c0_27 = arith.constant 0 : index
    %c0_28 = arith.constant 0 : index
    %45 = vector.load %arg2[%c8, %c0_27, %c0_28] : memref<9x8x4xf32, #tpu.memory_space<vmem>>, vector<1x8x4xf32>
    %46 = vector.shape_cast %45 : vector<1x8x4xf32> to vector<8x4xf32>
    %47 = vector.shape_cast %3 : vector<1x4x256xf32> to vector<4x256xf32>
    %cst_29 = arith.constant 0.000000e+00 : f32
    %48 = vector.broadcast %cst_29 : f32 to vector<8x256xf32>
    %c17_i32 = arith.constant 17 : i32
    %49 = tpu.dynamic_rotate %47 by %c17_i32 dim 1 : vector<4x256xf32>, i32 -> vector<4x256xf32>
    %50 = arith.andi %22, %26 : vector<4x256xi1>
    %cst_30 = arith.constant 0.000000e+00 : f32
    %51 = vector.broadcast %cst_30 : f32 to vector<4x256xf32>
    %52 = arith.select %50, %49, %51 : vector<4x256xi1>, vector<4x256xf32>
    %cst_31 = arith.constant dense<0.000000e+00> : vector<8x256xf32>
    %53 = tpu.matmul %30, %52, %cst_31 {dimension_numbers = #tpu.dot_dimension_numbers<[1], [0], [0], [1], [0, 0, 1, 1], [], []>} : vector<8x4xf32>, vector<4x256xf32>, vector<8x256xf32> -> vector<8x256xf32>
    %54 = arith.addf %48, %53 : vector<8x256xf32>
    %c16_i32_32 = arith.constant 16 : i32
    %55 = tpu.dynamic_rotate %47 by %c16_i32_32 dim 1 : vector<4x256xf32>, i32 -> vector<4x256xf32>
    %cst_33 = arith.constant 0.000000e+00 : f32
    %56 = vector.broadcast %cst_33 : f32 to vector<4x256xf32>
    %57 = arith.select %22, %55, %56 : vector<4x256xi1>, vector<4x256xf32>
    %cst_34 = arith.constant dense<0.000000e+00> : vector<8x256xf32>
    %58 = tpu.matmul %32, %57, %cst_34 {dimension_numbers = #tpu.dot_dimension_numbers<[1], [0], [0], [1], [0, 0, 1, 1], [], []>} : vector<8x4xf32>, vector<4x256xf32>, vector<8x256xf32> -> vector<8x256xf32>
    %59 = arith.addf %54, %58 : vector<8x256xf32>
    %c15_i32_35 = arith.constant 15 : i32
    %60 = tpu.dynamic_rotate %47 by %c15_i32_35 dim 1 : vector<4x256xf32>, i32 -> vector<4x256xf32>
    %61 = arith.andi %22, %28 : vector<4x256xi1>
    %cst_36 = arith.constant 0.000000e+00 : f32
    %62 = vector.broadcast %cst_36 : f32 to vector<4x256xf32>
    %63 = arith.select %61, %60, %62 : vector<4x256xi1>, vector<4x256xf32>
    %cst_37 = arith.constant dense<0.000000e+00> : vector<8x256xf32>
    %64 = tpu.matmul %34, %63, %cst_37 {dimension_numbers = #tpu.dot_dimension_numbers<[1], [0], [0], [1], [0, 0, 1, 1], [], []>} : vector<8x4xf32>, vector<4x256xf32>, vector<8x256xf32> -> vector<8x256xf32>
    %65 = arith.addf %59, %64 : vector<8x256xf32>
    %c1_i32_38 = arith.constant 1 : i32
    %66 = tpu.dynamic_rotate %47 by %c1_i32_38 dim 1 : vector<4x256xf32>, i32 -> vector<4x256xf32>
    %cst_39 = arith.constant 0.000000e+00 : f32
    %67 = vector.broadcast %cst_39 : f32 to vector<4x256xf32>
    %68 = arith.select %26, %66, %67 : vector<4x256xi1>, vector<4x256xf32>
    %cst_40 = arith.constant dense<0.000000e+00> : vector<8x256xf32>
    %69 = tpu.matmul %36, %68, %cst_40 {dimension_numbers = #tpu.dot_dimension_numbers<[1], [0], [0], [1], [0, 0, 1, 1], [], []>} : vector<8x4xf32>, vector<4x256xf32>, vector<8x256xf32> -> vector<8x256xf32>
    %70 = arith.addf %65, %69 : vector<8x256xf32>
    %cst_41 = arith.constant dense<0.000000e+00> : vector<8x256xf32>
    %71 = tpu.matmul %38, %47, %cst_41 {dimension_numbers = #tpu.dot_dimension_numbers<[1], [0], [0], [1], [0, 0, 1, 1], [], []>} : vector<8x4xf32>, vector<4x256xf32>, vector<8x256xf32> -> vector<8x256xf32>
    %72 = arith.addf %70, %71 : vector<8x256xf32>
    %c255_i32 = arith.constant 255 : i32
    %73 = tpu.dynamic_rotate %47 by %c255_i32 dim 1 : vector<4x256xf32>, i32 -> vector<4x256xf32>
    %cst_42 = arith.constant 0.000000e+00 : f32
    %74 = vector.broadcast %cst_42 : f32 to vector<4x256xf32>
    %75 = arith.select %28, %73, %74 : vector<4x256xi1>, vector<4x256xf32>
    %cst_43 = arith.constant dense<0.000000e+00> : vector<8x256xf32>
    %76 = tpu.matmul %40, %75, %cst_43 {dimension_numbers = #tpu.dot_dimension_numbers<[1], [0], [0], [1], [0, 0, 1, 1], [], []>} : vector<8x4xf32>, vector<4x256xf32>, vector<8x256xf32> -> vector<8x256xf32>
    %77 = arith.addf %72, %76 : vector<8x256xf32>
    %c241_i32 = arith.constant 241 : i32
    %78 = tpu.dynamic_rotate %47 by %c241_i32 dim 1 : vector<4x256xf32>, i32 -> vector<4x256xf32>
    %79 = arith.andi %24, %26 : vector<4x256xi1>
    %cst_44 = arith.constant 0.000000e+00 : f32
    %80 = vector.broadcast %cst_44 : f32 to vector<4x256xf32>
    %81 = arith.select %79, %78, %80 : vector<4x256xi1>, vector<4x256xf32>
    %cst_45 = arith.constant dense<0.000000e+00> : vector<8x256xf32>
    %82 = tpu.matmul %42, %81, %cst_45 {dimension_numbers = #tpu.dot_dimension_numbers<[1], [0], [0], [1], [0, 0, 1, 1], [], []>} : vector<8x4xf32>, vector<4x256xf32>, vector<8x256xf32> -> vector<8x256xf32>
    %83 = arith.addf %77, %82 : vector<8x256xf32>
    %c240_i32_46 = arith.constant 240 : i32
    %84 = tpu.dynamic_rotate %47 by %c240_i32_46 dim 1 : vector<4x256xf32>, i32 -> vector<4x256xf32>
    %cst_47 = arith.constant 0.000000e+00 : f32
    %85 = vector.broadcast %cst_47 : f32 to vector<4x256xf32>
    %86 = arith.select %24, %84, %85 : vector<4x256xi1>, vector<4x256xf32>
    %cst_48 = arith.constant dense<0.000000e+00> : vector<8x256xf32>
    %87 = tpu.matmul %44, %86, %cst_48 {dimension_numbers = #tpu.dot_dimension_numbers<[1], [0], [0], [1], [0, 0, 1, 1], [], []>} : vector<8x4xf32>, vector<4x256xf32>, vector<8x256xf32> -> vector<8x256xf32>
    %88 = arith.addf %83, %87 : vector<8x256xf32>
    %c239_i32 = arith.constant 239 : i32
    %89 = tpu.dynamic_rotate %47 by %c239_i32 dim 1 : vector<4x256xf32>, i32 -> vector<4x256xf32>
    %90 = arith.andi %24, %28 : vector<4x256xi1>
    %cst_49 = arith.constant 0.000000e+00 : f32
    %91 = vector.broadcast %cst_49 : f32 to vector<4x256xf32>
    %92 = arith.select %90, %89, %91 : vector<4x256xi1>, vector<4x256xf32>
    %cst_50 = arith.constant dense<0.000000e+00> : vector<8x256xf32>
    %93 = tpu.matmul %46, %92, %cst_50 {dimension_numbers = #tpu.dot_dimension_numbers<[1], [0], [0], [1], [0, 0, 1, 1], [], []>} : vector<8x4xf32>, vector<4x256xf32>, vector<8x256xf32> -> vector<8x256xf32>
    %94 = arith.addf %88, %93 : vector<8x256xf32>
    %c0_51 = arith.constant 0 : index
    %c4_52 = arith.constant 4 : index
    %c0_53 = arith.constant 0 : index
    %95 = vector.load %arg3[%c0_51, %c4_52, %c0_53] : memref<1x12x256xf32, #tpu.memory_space<vmem>>, vector<1x8x256xf32>
    %96 = vector.shape_cast %95 : vector<1x8x256xf32> to vector<8x256xf32>
    %97 = vector.shape_cast %94 : vector<8x256xf32> to vector<1x8x256xf32>
    tpu.vector_store %arg3[%c0_51, %c4_52, %c0_53], %97 {strides = array<i32>} : memref<1x12x256xf32, #tpu.memory_space<vmem>>, vector<1x8x256xf32>,
    return
  }
  func.func @transform_0(%arg0: i32) -> (i32, i32, i32) {
    %c0_i32 = arith.constant 0 : i32
    %c0_i32_0 = arith.constant 0 : i32
    %c0_i32_1 = arith.constant 0 : i32
    return %arg0, %c0_i32, %c0_i32_0 : i32, i32, i32
  }
  func.func @transform_1(%arg0: i32) -> (i32, i32, i32) {
    %c0_i32 = arith.constant 0 : i32
    %c0_i32_0 = arith.constant 0 : i32
    %c0_i32_1 = arith.constant 0 : i32
    %c0_i32_2 = arith.constant 0 : i32
    return %c0_i32, %c0_i32_0, %c0_i32_1 : i32, i32, i32
  }
  func.func @transform_2(%arg0: i32) -> (i32, i32, i32) {
    %c0_i32 = arith.constant 0 : i32
    %c0_i32_0 = arith.constant 0 : i32
    %c0_i32_1 = arith.constant 0 : i32
    return %arg0, %c0_i32, %c0_i32_0 : i32, i32, i32
  }
}

</mosaic_0001>

<llo_original>
// kernel: tpu_custom_call.1
$region0: #{tpu_custom_call.1}
  #allocation0 [shape = 'u32[]', space=smem, size = 0x4, offset = 0x4, fixed_abs, tag = 'smem constant byte address 0x4 - core index']
  #allocation1 [shape = 'u32[144,128]{1,0:T(1,128)}', space=vmem, size = 0x12000, scoped, tag = 'internal scratch']
  %s0 = inlined_call_operand.vmem [shape: f32[2,4,256], index: 0, kind: input, shape index: {}]
  %s1 = inlined_call_operand.vmem [shape: f32[9,8,4], index: 1, kind: input, shape index: {}]
  %s2 = inlined_call_operand.vmem [shape: f32[2,12,256], index: 2, kind: output, shape index: {}]
  %s3 = sld [smem:[#allocation0]]
  $region41: #{tpu_custom_call.1} parent=0
    _
  %s5 = ssub.s32 1, %s3
  %s6 = scalar_select 0, %s5, %s3
  loop: start=0, step=1, limit=4
  $region2: #{tpu_custom_call.1} parent=0 // loop_pre_header
    _
  $region3: #{tpu_custom_call.1} parent=0 // loop_header
    %s8 = sphi 0, %s12
    %p9 = scmp.ge.s32.totalorder %s8, 4
    %s18 = sphi 0, %s20
    %s21 = sphi 0, %s18
    %s22 = sphi 0, %s21
    %s38 = sphi 0, %s22
    %s42 = sphi 0, %s42
    %s44 = sphi 0, %s42
    %s45 = sphi 0, %s44
    %s59 = sphi 0, %s45
    %s65 = sphi 0, %s67
    %s68 = sphi 0, %s65
    %s69 = sphi 0, %s68
    %s85 = sphi 0, %s69
  $region4: #{tpu_custom_call.1} parent=0 // loop_header_branch
    %11 = sbr.rel (%p9) target = $region8
  $region5: #{tpu_custom_call.1} parent=0 // loop_body
    %s13 = ssub.s32 %s8, 1
    %s14 = ssub.s32 %s8, 2
    %s15 = sadd.s32 %s8, 1
    %s16 = ssub.s32 %s8, %s15
    %p17 = scmp.eq.s32.totalorder %s16, 0
    %s19 = sadd.s32 %s18, 1
    %s20 = scalar_select %p17, %s18, %s19
    %p23 = pneg %p17
    %p24 = scmp.eq.s32.totalorder %s8, 1
    %p25 = por %p23, %p24
    %p26 = scmp.ne.s32.totalorder %s18, %s21
    %p27 = scmp.eq.s32.totalorder %s8, 0
    %p28 = por %p26, %p27
    %p29 = scmp.ne.s32.totalorder %s18, %s21
    %p30 = scmp.eq.s32.totalorder %s13, 1
    %p31 = por %p29, %p30
    %p32 = scmp.ne.s32.totalorder %s21, %s22
    %p33 = scmp.eq.s32.totalorder %s13, 0
    %p34 = por %p32, %p33
    %p35 = scmp.ne.s32.totalorder %s21, %s22
    %p36 = scmp.eq.s32.totalorder %s14, 1
    %p37 = por %p35, %p36
    %p39 = scmp.ne.s32.totalorder %s22, %s38
    %p40 = scmp.eq.s32.totalorder %s14, 0
    %p41 = por %p39, %p40
    %s43 = sadd.s32 %s42, 1
    %p46 = scmp.eq.s32.totalorder %s8, 1
    %p47 = scmp.ne.s32.totalorder %s42, %s44
    %p48 = scmp.eq.s32.totalorder %s8, 0
    %p49 = por %p47, %p48
    %p50 = scmp.ne.s32.totalorder %s42, %s44
    %p51 = scmp.eq.s32.totalorder %s13, 1
    %p52 = por %p50, %p51
    %p53 = scmp.ne.s32.totalorder %s44, %s45
    %p54 = scmp.eq.s32.totalorder %s13, 0
    %p55 = por %p53, %p54
    %p56 = scmp.ne.s32.totalorder %s44, %s45
    %p57 = scmp.eq.s32.totalorder %s14, 1
    %p58 = por %p56, %p57
    %p60 = scmp.ne.s32.totalorder %s45, %s59
    %p61 = scmp.eq.s32.totalorder %s14, 0
    %p62 = por %p60, %p61
    %s63 = ssub.s32 %s8, %s15
    %p64 = scmp.eq.s32.totalorder %s63, 0
    %s66 = sadd.s32 %s65, 1
    %s67 = scalar_select %p64, %s65, %s66
    %p70 = pneg %p64
    %p71 = scmp.eq.s32.totalorder %s8, 1
    %p72 = por %p70, %p71
    %p73 = scmp.ne.s32.totalorder %s65, %s68
    %p74 = scmp.eq.s32.totalorder %s8, 0
    %p75 = por %p73, %p74
    %p76 = scmp.ne.s32.totalorder %s65, %s68
    %p77 = scmp.eq.s32.totalorder %s13, 1
    %p78 = por %p76, %p77
    %p79 = scmp.ne.s32.totalorder %s68, %s69
    %p80 = scmp.eq.s32.totalorder %s13, 0
    %p81 = por %p79, %p80
    %p82 = scmp.ne.s32.totalorder %s68, %s69
    %p83 = scmp.eq.s32.totalorder %s14, 1
    %p84 = por %p82, %p83
    %p86 = scmp.ne.s32.totalorder %s69, %s85
    %p87 = scmp.eq.s32.totalorder %s14, 0
    %p88 = por %p86, %p87
    %p89 = scmp.le.s32.totalorder 1, %s8
    %p90 = scmp.lt.s32.totalorder %s8, 3
    %p91 = pnand %p89, %p90
    %p92 = pneg %p91
    // Predicated region
    $region9: #{tpu_custom_call.1} parent=5 // pred_check
      _
    $region10: #{tpu_custom_call.1} parent=5 // pred_check_branch
      %94 = sbr.rel (%p91) target = $region12
    $region11: #{tpu_custom_call.1} parent=5 // pred_region
      %s95 = ssub.s32 %s8, 1
      // Predicated region
      $region13: #{tpu_custom_call.1} parent=11 // pred_check
        %p96 = pneg %p55
      $region14: #{tpu_custom_call.1} parent=11 // pred_check_branch
        %98 = sbr.rel (%p96) target = $region16
      $region15: #{tpu_custom_call.1} parent=11 // pred_region
        _
      $region16: #{tpu_custom_call.1} parent=11 // pred_fallthru
        _
    $region12: #{tpu_custom_call.1} parent=5 // pred_fallthru
      _
    %p99 = scmp.lt.s32.totalorder %s8, 2
    // Predicated region
    $region17: #{tpu_custom_call.1} parent=5 // pred_check
      %p100 = pneg %p99
    $region18: #{tpu_custom_call.1} parent=5 // pred_check_branch
      %102 = sbr.rel (%p100) target = $region20
    $region19: #{tpu_custom_call.1} parent=5 // pred_region
      // Predicated region
      $region21: #{tpu_custom_call.1} parent=19 // pred_check
        %p103 = pneg %p28
      $region22: #{tpu_custom_call.1} parent=19 // pred_check_branch
        %105 = sbr.rel (%p103) target = $region24
      $region23: #{tpu_custom_call.1} parent=19 // pred_region
        %p106 = scmp.lt.s32.totalorder %s8, 1
        %s107 = scalar_select %p106, %s8, 1
        %s108 = smul.addr %s107, 2
        %s109 = smul.addr %s108, 4
        %s110 = scalar_lea.vmem %s0, %s109
      $region24: #{tpu_custom_call.1} parent=19 // pred_fallthru
        _
    $region20: #{tpu_custom_call.1} parent=5 // pred_fallthru
      _
    %p111 = scmp.le.s32.totalorder 1, %s8
    %p112 = scmp.lt.s32.totalorder %s8, 3
    %p113 = pnand %p111, %p112
    %p114 = pneg %p113
    // Predicated region
    $region25: #{tpu_custom_call.1} parent=5 // pred_check
      _
    $region26: #{tpu_custom_call.1} parent=5 // pred_check_branch
      %116 = sbr.rel (%p113) target = $region28
    $region27: #{tpu_custom_call.1} parent=5 // pred_region
      %s117 = ssub.s32 %s8, 1
      %p118 = scmp.lt.s32.totalorder %s13, 1
      %s119 = scalar_select %p118, %s13, 1
      %s120 = smul.addr %s119, 2
      %s121 = smul.addr %s120, 4
      %s122 = scalar_lea.vmem %s0, %s121
      %p123 = pneg %p34
      %p124 = pneg %p31
      %p125 = pneg %p55
      %p126 = pneg %p52
      %p127 = pneg %p81
      %p128 = pneg %p78
      %p129 = scmp.lt.s32.totalorder %s13, 1
      %s130 = scalar_select %p129, %s13, 1
      %s131 = smul.addr %s130, 4
      %s132 = smul.addr %s131, 8
      %s133 = scalar_lea.vmem %s2, %s132
      %p134 = scmp.lt.s32.totalorder %s13, 1
      %s135 = scalar_select %p134, %s13, 1
      %s136 = smul.addr %s135, 2
      %s137 = smul.addr %s136, 4
      %s138 = scalar_lea.vmem %s0, %s137
      %p139 = scmp.lt.s32.totalorder %s13, 1
      %s140 = scalar_select %p139, %s13, 1
      %s141 = smul.addr %s140, 4
      %s142 = smul.addr %s141, 8
      %s143 = scalar_lea.vmem %s2, %s142
      %v144 = vld [vmem:[%s138] sm:$0xff]
      %v146 = vcombine.high %v144, %v144
      %148 = vst [vmem:[%s143] sm:$0xf] %v144
      %149 = vst [vmem:[%s143 + $0x8] sm:$0xf] %v146
      %v150 = vmax.f32 %v144, 0.0
      %v151 = vlaneseq
      %v152 = vand.u32 %v151, 127
      %v153 = vadd.s32 %v152, 128
      %vm154 = vcmp.lt.s32.totalorder %v152, 0
      %v155 = vsub.s32 0, %v152
      %v156 = vsel %vm154, %v155, %v152
      %v157 = vshrl.u32 %v156, 4
      %v158 = vand.u32 %v156, 15
      %v159 = vsub.s32 0, %v158
      %v160 = vsel %vm154, %v159, %v158
      %vm161 = vcmp.lt.s32.totalorder %v153, 0
      %v162 = vsub.s32 0, %v153
      %v163 = vsel %vm161, %v162, %v153
      %v164 = vshrl.u32 %v163, 4
      %v165 = vand.u32 %v163, 15
      %v166 = vsub.s32 0, %v165
      %v167 = vsel %vm161, %v166, %v165
      %vm168 = vcmp.ne.s32.totalorder %v160, 0
      %vm169 = vcmp.ne.s32.totalorder %v167, 0
      %vm170 = vcmp.lt.s32.totalorder %v160, 0
      %vm171 = vcmp.lt.s32.totalorder %v167, 0
      %vm172 = vmand %vm170, %vm168
      %vm173 = vmand %vm171, %vm169
      %v174 = vadd.s32 %v160, 16
      %v175 = vadd.s32 %v167, 16
      %v176 = vsel %vm172, %v174, %v160
      %v177 = vsel %vm173, %v175, %v167
      %vm178 = vcmp.ge.s32.totalorder %v152, 16
      %vm179 = vcmp.ge.s32.totalorder %v153, 16
      %vm180 = vcmp.lt.s32.totalorder %v152, 240
      %vm181 = vcmp.lt.s32.totalorder %v153, 240
      %vm182 = vcmp.gt.s32.totalorder %v176, 0
      %vm183 = vcmp.gt.s32.totalorder %v177, 0
      %vm184 = vcmp.lt.s32.totalorder %v176, 15
      %vm185 = vcmp.lt.s32.totalorder %v177, 15
      %v186 = vld [vmem:[%s1] sm:$0xff]
      %s187 = scalar_lea.vmem %s1, 8
      %v188 = vld [vmem:[%s187] sm:$0xff]
      %s189 = scalar_lea.vmem %s1, 16
      %v190 = vld [vmem:[%s189] sm:$0xff]
      %s191 = scalar_lea.vmem %s1, 24
      %v192 = vld [vmem:[%s191] sm:$0xff]
      %s193 = scalar_lea.vmem %s1, 32
      %v194 = vld [vmem:[%s193] sm:$0xff]
      %s195 = scalar_lea.vmem %s1, 40
      %v196 = vld [vmem:[%s195] sm:$0xff]
      %s197 = scalar_lea.vmem %s1, 48
      %v198 = vld [vmem:[%s197] sm:$0xff]
      %s199 = scalar_lea.vmem %s1, 56
      %v200 = vld [vmem:[%s199] sm:$0xff]
      %s201 = scalar_lea.vmem %s1, 64
      %v202 = vld [vmem:[%s201] sm:$0xff]
      %v204 = vcombine.high %v150, %v150
      %206 = vrot.lane.b32.xlu0 %v150, 17
      %v207 = vpop.permute.xlu0 %206
      %208 = vrot.lane.b32.xlu0 %v204, 17
      %v209 = vpop.permute.xlu0 %208
      %vm210 = vcmp.lt.s32.totalorder %v152, 17
      %v211 = vsel %vm210, %v207, %v209
      %v212 = vsel %vm210, %v209, %v207
      %vm213 = vmand %vm178, %vm182
      %vm214 = vmand %vm179, %vm183
      %v215 = vsel %vm213, %v212, 0.0
      %v216 = vsel %vm214, %v211, 0.0
      %217 = vrot.lane.b32.xlu0 %v150, 16
      %v218 = vpop.permute.xlu0 %217
      %219 = vrot.lane.b32.xlu0 %v204, 16
      %v220 = vpop.permute.xlu0 %219
      %vm221 = vcmp.lt.s32.totalorder %v152, 16
      %v222 = vsel %vm221, %v218, %v220
      %v223 = vsel %vm221, %v220, %v218
      %v224 = vsel %vm178, %v223, 0.0
      %v225 = vsel %vm179, %v222, 0.0
      %vm226 = vcmask 31744
      %v228 = vsel %vm226, %v188, 0
      %vm230 = vcmask 1043456
      %v232 = vsel %vm230, %v224, 0
      %v235 = vsel %vm230, %v225, 0
      %237 = vmatprep.subr.mxu0 0.0
      %238 = vmatpush1.msra.mxu0 0.0
      %239 = vmatprep.subr.mxu0 0.0
      %240 = vmatpush1.msra.mxu0 0.0
      %241 = vmatprep.subr.mxu0 0.0
      %242 = vmatpush1.msra.mxu0 0.0
      %243 = vmatprep.subr.mxu0 0.0
      %244 = vmatpush1.msra.mxu0 0.0
      %245 = vmatprep.subr.mxu0 0.0
      %246 = vmatpush1.msra.mxu0 0.0
      %247 = vmatprep.subr.mxu0 0.0
      %248 = vmatpush1.msra.mxu0 0.0
      %249 = vmatprep.subr.mxu0 0.0
      %250 = vmatpush1.msra.mxu0 0.0
      %251 = vmatprep.subr.mxu0 0.0
      %252 = vmatpush1.msra.mxu0 0.0
      %253 = vmatprep.subr.mxu0 0.0
      %254 = vmatpush1.msra.mxu0 0.0
      %255 = vmatprep.subr.mxu0 0.0
      %256 = vmatpush1.msra.mxu0 0.0
      %257 = vmatprep.subr.mxu0 0.0
      %258 = vmatpush1.msra.mxu0 0.0
      %259 = vmatprep.subr.mxu0 0.0
      %260 = vmatpush1.msra.mxu0 0.0
      %261 = vmatprep.subr.mxu0 0.0
      %262 = vmatpush1.msra.mxu0 0.0
      %263 = vmatprep.subr.mxu0 0.0
      %264 = vmatpush1.msra.mxu0 0.0
      %265 = vmatprep.subr.mxu0 0.0
      %266 = vmatpush1.msra.mxu0 0.0
      %267 = vmatprep.subr.mxu0 %v235
      %268 = vmatpush1.msra.mxu0 %v232
      %269 = vmatprep.subr.mxu0 0.0
      %270 = vmatpush2.msra.mxu0 0.0
      %271 = vmatprep.subr.mxu0 0.0
      %272 = vmatpush2.msra.mxu0 0.0
      %273 = vmatprep.subr.mxu0 0.0
      %274 = vmatpush2.msra.mxu0 0.0
      %275 = vmatprep.subr.mxu0 0.0
      %276 = vmatpush2.msra.mxu0 0.0
      %277 = vmatprep.subr.mxu0 0.0
      %278 = vmatpush2.msra.mxu0 0.0
      %279 = vmatprep.subr.mxu0 0.0
      %280 = vmatpush2.msra.mxu0 0.0
      %281 = vmatprep.subr.mxu0 0.0
      %282 = vmatpush2.msra.mxu0 0.0
      %283 = vmatprep.subr.mxu0 0.0
      %284 = vmatpush2.msra.mxu0 0.0
      %285 = vmatprep.subr.mxu0 0.0
      %286 = vmatpush2.msra.mxu0 0.0
      %287 = vmatprep.subr.mxu0 0.0
      %288 = vmatpush2.msra.mxu0 0.0
      %289 = vmatprep.subr.mxu0 0.0
      %290 = vmatpush2.msra.mxu0 0.0
      %291 = vmatprep.subr.mxu0 0.0
      %292 = vmatpush2.msra.mxu0 0.0
      %293 = vmatprep.subr.mxu0 0.0
      %294 = vmatpush2.msra.mxu0 0.0
      %295 = vmatprep.subr.mxu0 0.0
      %296 = vmatpush2.msra.mxu0 0.0
      %297 = vmatprep.subr.mxu0 0.0
      %298 = vmatpush2.msra.mxu0 0.0
      %299 = vmatprep.subr.mxu0 0.0
      %300 = vmatpush2.msra.mxu0 0.0
      %301 = vmatprep.mubr.f32.mxu0 0.0
      %302 = vmatmul.mubr.f32.gmra.mxu0 %v228
      %v303 = vpop.f32.mrf.mxu0
      %v304 = vadd.f32 0.0, %v303
      %v305 = vpop.f32.mrf.mxu0
      %v306 = vadd.f32 0.0, %v305
      %307 = vdwg.mxu0
      %v309 = vsel %vm226, %v186, 0
      %v312 = vsel %vm230, %v215, 0
      %v315 = vsel %vm230, %v216, 0
      %317 = vmatprep.subr.mxu0 0.0
      %318 = vmatpush1.msra.mxu0 0.0
      %319 = vmatprep.subr.mxu0 0.0
      %320 = vmatpush1.msra.mxu0 0.0
      %321 = vmatprep.subr.mxu0 0.0
      %322 = vmatpush1.msra.mxu0 0.0
      %323 = vmatprep.subr.mxu0 0.0
      %324 = vmatpush1.msra.mxu0 0.0
      %325 = vmatprep.subr.mxu0 0.0
      %326 = vmatpush1.msra.mxu0 0.0
      %327 = vmatprep.subr.mxu0 0.0
      %328 = vmatpush1.msra.mxu0 0.0
      %329 = vmatprep.subr.mxu0 0.0
      %330 = vmatpush1.msra.mxu0 0.0
      %331 = vmatprep.subr.mxu0 0.0
      %332 = vmatpush1.msra.mxu0 0.0
      %333 = vmatprep.subr.mxu0 0.0
      %334 = vmatpush1.msra.mxu0 0.0
      %335 = vmatprep.subr.mxu0 0.0
      %336 = vmatpush1.msra.mxu0 0.0
      %337 = vmatprep.subr.mxu0 0.0
      %338 = vmatpush1.msra.mxu0 0.0
      %339 = vmatprep.subr.mxu0 0.0
      %340 = vmatpush1.msra.mxu0 0.0
      %341 = vmatprep.subr.mxu0 0.0
      %342 = vmatpush1.msra.mxu0 0.0
      %343 = vmatprep.subr.mxu0 0.0
      %344 = vmatpush1.msra.mxu0 0.0
      %345 = vmatprep.subr.mxu0 0.0
      %346 = vmatpush1.msra.mxu0 0.0
      %347 = vmatprep.subr.mxu0 %v315
      %348 = vmatpush1.msra.mxu0 %v312
      %349 = vmatprep.subr.mxu0 0.0
      %350 = vmatpush2.msra.mxu0 0.0
      %351 = vmatprep.subr.mxu0 0.0
      %352 = vmatpush2.msra.mxu0 0.0
      %353 = vmatprep.subr.mxu0 0.0
      %354 = vmatpush2.msra.mxu0 0.0
      %355 = vmatprep.subr.mxu0 0.0
      %356 = vmatpush2.msra.mxu0 0.0
      %357 = vmatprep.subr.mxu0 0.0
      %358 = vmatpush2.msra.mxu0 0.0
      %359 = vmatprep.subr.mxu0 0.0
      %360 = vmatpush2.msra.mxu0 0.0
      %361 = vmatprep.subr.mxu0 0.0
      %362 = vmatpush2.msra.mxu0 0.0
      %363 = vmatprep.subr.mxu0 0.0
      %364 = vmatpush2.msra.mxu0 0.0
      %365 = vmatprep.subr.mxu0 0.0
      %366 = vmatpush2.msra.mxu0 0.0
      %367 = vmatprep.subr.mxu0 0.0
      %368 = vmatpush2.msra.mxu0 0.0
      %369 = vmatprep.subr.mxu0 0.0
      %370 = vmatpush2.msra.mxu0 0.0
      %371 = vmatprep.subr.mxu0 0.0
      %372 = vmatpush2.msra.mxu0 0.0
      %373 = vmatprep.subr.mxu0 0.0
      %374 = vmatpush2.msra.mxu0 0.0
      %375 = vmatprep.subr.mxu0 0.0
      %376 = vmatpush2.msra.mxu0 0.0
      %377 = vmatprep.subr.mxu0 0.0
      %378 = vmatpush2.msra.mxu0 0.0
      %379 = vmatprep.subr.mxu0 0.0
      %380 = vmatpush2.msra.mxu0 0.0
      %381 = vmatprep.mubr.f32.mxu0 0.0
      %382 = vmatmul.mubr.f32.gmra.mxu0 %v309
      %v383 = vpop.f32.mrf.mxu0
      %v384 = vadd.f32 %v304, %v383
      %v385 = vpop.f32.mrf.mxu0
      %v386 = vadd.f32 %v306, %v385
      %387 = vdwg.mxu0
      %388 = vrot.lane.b32.xlu0 %v150, 15
      %v389 = vpop.permute.xlu0 %388
      %390 = vrot.lane.b32.xlu0 %v204, 15
      %v391 = vpop.permute.xlu0 %390
      %vm392 = vcmp.lt.s32.totalorder %v152, 15
      %v393 = vsel %vm392, %v389, %v391
      %v394 = vsel %vm392, %v391, %v389
      %vm395 = vmand %vm178, %vm184
      %vm396 = vmand %vm179, %vm185
      %v397 = vsel %vm395, %v394, 0.0
      %v398 = vsel %vm396, %v393, 0.0
      %v400 = vsel %vm226, %v190, 0
      %v403 = vsel %vm230, %v397, 0
      %v406 = vsel %vm230, %v398, 0
      %408 = vmatprep.subr.mxu0 0.0
      %409 = vmatpush1.msra.mxu0 0.0
      %410 = vmatprep.subr.mxu0 0.0
      %411 = vmatpush1.msra.mxu0 0.0
      %412 = vmatprep.subr.mxu0 0.0
      %413 = vmatpush1.msra.mxu0 0.0
      %414 = vmatprep.subr.mxu0 0.0
      %415 = vmatpush1.msra.mxu0 0.0
      %416 = vmatprep.subr.mxu0 0.0
      %417 = vmatpush1.msra.mxu0 0.0
      %418 = vmatprep.subr.mxu0 0.0
      %419 = vmatpush1.msra.mxu0 0.0
      %420 = vmatprep.subr.mxu0 0.0
      %421 = vmatpush1.msra.mxu0 0.0
      %422 = vmatprep.subr.mxu0 0.0
      %423 = vmatpush1.msra.mxu0 0.0
      %424 = vmatprep.subr.mxu0 0.0
      %425 = vmatpush1.msra.mxu0 0.0
      %426 = vmatprep.subr.mxu0 0.0
      %427 = vmatpush1.msra.mxu0 0.0
      %428 = vmatprep.subr.mxu0 0.0
      %429 = vmatpush1.msra.mxu0 0.0
      %430 = vmatprep.subr.mxu0 0.0
      %431 = vmatpush1.msra.mxu0 0.0
      %432 = vmatprep.subr.mxu0 0.0
      %433 = vmatpush1.msra.mxu0 0.0
      %434 = vmatprep.subr.mxu0 0.0
      %435 = vmatpush1.msra.mxu0 0.0
      %436 = vmatprep.subr.mxu0 0.0
      %437 = vmatpush1.msra.mxu0 0.0
      %438 = vmatprep.subr.mxu0 %v406
      %439 = vmatpush1.msra.mxu0 %v403
      %440 = vmatprep.subr.mxu0 0.0
      %441 = vmatpush2.msra.mxu0 0.0
      %442 = vmatprep.subr.mxu0 0.0
      %443 = vmatpush2.msra.mxu0 0.0
      %444 = vmatprep.subr.mxu0 0.0
      %445 = vmatpush2.msra.mxu0 0.0
      %446 = vmatprep.subr.mxu0 0.0
      %447 = vmatpush2.msra.mxu0 0.0
      %448 = vmatprep.subr.mxu0 0.0
      %449 = vmatpush2.msra.mxu0 0.0
      %450 = vmatprep.subr.mxu0 0.0
      %451 = vmatpush2.msra.mxu0 0.0
      %452 = vmatprep.subr.mxu0 0.0
      %453 = vmatpush2.msra.mxu0 0.0
      %454 = vmatprep.subr.mxu0 0.0
      %455 = vmatpush2.msra.mxu0 0.0
      %456 = vmatprep.subr.mxu0 0.0
      %457 = vmatpush2.msra.mxu0 0.0
      %458 = vmatprep.subr.mxu0 0.0
      %459 = vmatpush2.msra.mxu0 0.0
      %460 = vmatprep.subr.mxu0 0.0
      %461 = vmatpush2.msra.mxu0 0.0
      %462 = vmatprep.subr.mxu0 0.0
      %463 = vmatpush2.msra.mxu0 0.0
      %464 = vmatprep.subr.mxu0 0.0
      %465 = vmatpush2.msra.mxu0 0.0
      %466 = vmatprep.subr.mxu0 0.0
      %467 = vmatpush2.msra.mxu0 0.0
      %468 = vmatprep.subr.mxu0 0.0
      %469 = vmatpush2.msra.mxu0 0.0
      %470 = vmatprep.subr.mxu0 0.0
      %471 = vmatpush2.msra.mxu0 0.0
      %472 = vmatprep.mubr.f32.mxu0 0.0
      %473 = vmatmul.mubr.f32.gmra.mxu0 %v400
      %v474 = vpop.f32.mrf.mxu0
      %v475 = vadd.f32 0.0, %v474
      %v476 = vpop.f32.mrf.mxu0
      %v477 = vadd.f32 0.0, %v476
      %478 = vdwg.mxu0
      %v479 = vadd.f32 %v384, %v475
      %v480 = vadd.f32 %v386, %v477
      %481 = vrot.lane.b32.xlu0 %v150, 1
      %v482 = vpop.permute.xlu0 %481
      %483 = vrot.lane.b32.xlu0 %v204, 1
      %v484 = vpop.permute.xlu0 %483
      %vm485 = vcmp.lt.s32.totalorder %v152, 1
      %v486 = vsel %vm485, %v482, %v484
      %v487 = vsel %vm485, %v484, %v482
      %v488 = vsel %vm182, %v487, 0.0
      %v489 = vsel %vm183, %v486, 0.0
      %v491 = vsel %vm226, %v192, 0
      %v494 = vsel %vm230, %v488, 0
      %v497 = vsel %vm230, %v489, 0
      %499 = vmatprep.subr.mxu0 0.0
      %500 = vmatpush1.msra.mxu0 0.0
      %501 = vmatprep.subr.mxu0 0.0
      %502 = vmatpush1.msra.mxu0 0.0
      %503 = vmatprep.subr.mxu0 0.0
      %504 = vmatpush1.msra.mxu0 0.0
      %505 = vmatprep.subr.mxu0 0.0
      %506 = vmatpush1.msra.mxu0 0.0
      %507 = vmatprep.subr.mxu0 0.0
      %508 = vmatpush1.msra.mxu0 0.0
      %509 = vmatprep.subr.mxu0 0.0
      %510 = vmatpush1.msra.mxu0 0.0
      %511 = vmatprep.subr.mxu0 0.0
      %512 = vmatpush1.msra.mxu0 0.0
      %513 = vmatprep.subr.mxu0 0.0
      %514 = vmatpush1.msra.mxu0 0.0
      %515 = vmatprep.subr.mxu0 0.0
      %516 = vmatpush1.msra.mxu0 0.0
      %517 = vmatprep.subr.mxu0 0.0
      %518 = vmatpush1.msra.mxu0 0.0
      %519 = vmatprep.subr.mxu0 0.0
      %520 = vmatpush1.msra.mxu0 0.0
      %521 = vmatprep.subr.mxu0 0.0
      %522 = vmatpush1.msra.mxu0 0.0
      %523 = vmatprep.subr.mxu0 0.0
      %524 = vmatpush1.msra.mxu0 0.0
      %525 = vmatprep.subr.mxu0 0.0
      %526 = vmatpush1.msra.mxu0 0.0
      %527 = vmatprep.subr.mxu0 0.0
      %528 = vmatpush1.msra.mxu0 0.0
      %529 = vmatprep.subr.mxu0 %v497
      %530 = vmatpush1.msra.mxu0 %v494
      %531 = vmatprep.subr.mxu0 0.0
      %532 = vmatpush2.msra.mxu0 0.0
      %533 = vmatprep.subr.mxu0 0.0
      %534 = vmatpush2.msra.mxu0 0.0
      %535 = vmatprep.subr.mxu0 0.0
      %536 = vmatpush2.msra.mxu0 0.0
      %537 = vmatprep.subr.mxu0 0.0
      %538 = vmatpush2.msra.mxu0 0.0
      %539 = vmatprep.subr.mxu0 0.0
      %540 = vmatpush2.msra.mxu0 0.0
      %541 = vmatprep.subr.mxu0 0.0
      %542 = vmatpush2.msra.mxu0 0.0
      %543 = vmatprep.subr.mxu0 0.0
      %544 = vmatpush2.msra.mxu0 0.0
      %545 = vmatprep.subr.mxu0 0.0
      %546 = vmatpush2.msra.mxu0 0.0
      %547 = vmatprep.subr.mxu0 0.0
      %548 = vmatpush2.msra.mxu0 0.0
      %549 = vmatprep.subr.mxu0 0.0
      %550 = vmatpush2.msra.mxu0 0.0
      %551 = vmatprep.subr.mxu0 0.0
      %552 = vmatpush2.msra.mxu0 0.0
      %553 = vmatprep.subr.mxu0 0.0
      %554 = vmatpush2.msra.mxu0 0.0
      %555 = vmatprep.subr.mxu0 0.0
      %556 = vmatpush2.msra.mxu0 0.0
      %557 = vmatprep.subr.mxu0 0.0
      %558 = vmatpush2.msra.mxu0 0.0
      %559 = vmatprep.subr.mxu0 0.0
      %560 = vmatpush2.msra.mxu0 0.0
      %561 = vmatprep.subr.mxu0 0.0
      %562 = vmatpush2.msra.mxu0 0.0
      %563 = vmatprep.mubr.f32.mxu0 0.0
      %564 = vmatmul.mubr.f32.gmra.mxu0 %v491
      %v565 = vpop.f32.mrf.mxu0
      %v566 = vadd.f32 0.0, %v565
      %v567 = vpop.f32.mrf.mxu0
      %v568 = vadd.f32 0.0, %v567
      %569 = vdwg.mxu0
      %v570 = vadd.f32 %v479, %v566
      %v571 = vadd.f32 %v480, %v568
      %v573 = vsel %vm226, %v194, 0
      %v575 = vsel %vm230, %v150, 0
      %v577 = vsel %vm230, %v204, 0
      %579 = vmatprep.subr.mxu0 0.0
      %580 = vmatpush1.msra.mxu0 0.0
      %581 = vmatprep.subr.mxu0 0.0
      %582 = vmatpush1.msra.mxu0 0.0
      %583 = vmatprep.subr.mxu0 0.0
      %584 = vmatpush1.msra.mxu0 0.0
      %585 = vmatprep.subr.mxu0 0.0
      %586 = vmatpush1.msra.mxu0 0.0
      %587 = vmatprep.subr.mxu0 0.0
      %588 = vmatpush1.msra.mxu0 0.0
      %589 = vmatprep.subr.mxu0 0.0
      %590 = vmatpush1.msra.mxu0 0.0
      %591 = vmatprep.subr.mxu0 0.0
      %592 = vmatpush1.msra.mxu0 0.0
      %593 = vmatprep.subr.mxu0 0.0
      %594 = vmatpush1.msra.mxu0 0.0
      %595 = vmatprep.subr.mxu0 0.0
      %596 = vmatpush1.msra.mxu0 0.0
      %597 = vmatprep.subr.mxu0 0.0
      %598 = vmatpush1.msra.mxu0 0.0
      %599 = vmatprep.subr.mxu0 0.0
      %600 = vmatpush1.msra.mxu0 0.0
      %601 = vmatprep.subr.mxu0 0.0
      %602 = vmatpush1.msra.mxu0 0.0
      %603 = vmatprep.subr.mxu0 0.0
      %604 = vmatpush1.msra.mxu0 0.0
      %605 = vmatprep.subr.mxu0 0.0
      %606 = vmatpush1.msra.mxu0 0.0
      %607 = vmatprep.subr.mxu0 0.0
      %608 = vmatpush1.msra.mxu0 0.0
      %609 = vmatprep.subr.mxu0 %v577
      %610 = vmatpush1.msra.mxu0 %v575
      %611 = vmatprep.subr.mxu0 0.0
      %612 = vmatpush2.msra.mxu0 0.0
      %613 = vmatprep.subr.mxu0 0.0
      %614 = vmatpush2.msra.mxu0 0.0
      %615 = vmatprep.subr.mxu0 0.0
      %616 = vmatpush2.msra.mxu0 0.0
      %617 = vmatprep.subr.mxu0 0.0
      %618 = vmatpush2.msra.mxu0 0.0
      %619 = vmatprep.subr.mxu0 0.0
      %620 = vmatpush2.msra.mxu0 0.0
      %621 = vmatprep.subr.mxu0 0.0
      %622 = vmatpush2.msra.mxu0 0.0
      %623 = vmatprep.subr.mxu0 0.0
      %624 = vmatpush2.msra.mxu0 0.0
      %625 = vmatprep.subr.mxu0 0.0
      %626 = vmatpush2.msra.mxu0 0.0
      %627 = vmatprep.subr.mxu0 0.0
      %628 = vmatpush2.msra.mxu0 0.0
      %629 = vmatprep.subr.mxu0 0.0
      %630 = vmatpush2.msra.mxu0 0.0
      %631 = vmatprep.subr.mxu0 0.0
      %632 = vmatpush2.msra.mxu0 0.0
      %633 = vmatprep.subr.mxu0 0.0
      %634 = vmatpush2.msra.mxu0 0.0
      %635 = vmatprep.subr.mxu0 0.0
      %636 = vmatpush2.msra.mxu0 0.0
      %637 = vmatprep.subr.mxu0 0.0
      %638 = vmatpush2.msra.mxu0 0.0
      %639 = vmatprep.subr.mxu0 0.0
      %640 = vmatpush2.msra.mxu0 0.0
      %641 = vmatprep.subr.mxu0 0.0
      %642 = vmatpush2.msra.mxu0 0.0
      %643 = vmatprep.mubr.f32.mxu0 0.0
      %644 = vmatmul.mubr.f32.gmra.mxu0 %v573
      %v645 = vpop.f32.mrf.mxu0
      %v646 = vadd.f32 0.0, %v645
      %v647 = vpop.f32.mrf.mxu0
      %v648 = vadd.f32 0.0, %v647
      %649 = vdwg.mxu0
      %v650 = vadd.f32 %v570, %v646
      %v651 = vadd.f32 %v571, %v648
      %652 = vrot.lane.b32.xlu0 %v150, 127
      %v653 = vpop.permute.xlu0 %652
      %654 = vrot.lane.b32.xlu0 %v204, 127
      %v655 = vpop.permute.xlu0 %654
      %vm656 = vcmp.lt.s32.totalorder %v152, 127
      %v657 = vsel %vm656, %v653, %v655
      %v658 = vsel %vm656, %v655, %v653
      %v659 = vsel %vm184, %v657, 0.0
      %v660 = vsel %vm185, %v658, 0.0
      %v662 = vsel %vm226, %v196, 0
      %v665 = vsel %vm230, %v659, 0
      %v668 = vsel %vm230, %v660, 0
      %670 = vmatprep.subr.mxu0 0.0
      %671 = vmatpush1.msra.mxu0 0.0
      %672 = vmatprep.subr.mxu0 0.0
      %673 = vmatpush1.msra.mxu0 0.0
      %674 = vmatprep.subr.mxu0 0.0
      %675 = vmatpush1.msra.mxu0 0.0
      %676 = vmatprep.subr.mxu0 0.0
      %677 = vmatpush1.msra.mxu0 0.0
      %678 = vmatprep.subr.mxu0 0.0
      %679 = vmatpush1.msra.mxu0 0.0
      %680 = vmatprep.subr.mxu0 0.0
      %681 = vmatpush1.msra.mxu0 0.0
      %682 = vmatprep.subr.mxu0 0.0
      %683 = vmatpush1.msra.mxu0 0.0
      %684 = vmatprep.subr.mxu0 0.0
      %685 = vmatpush1.msra.mxu0 0.0
      %686 = vmatprep.subr.mxu0 0.0
      %687 = vmatpush1.msra.mxu0 0.0
      %688 = vmatprep.subr.mxu0 0.0
      %689 = vmatpush1.msra.mxu0 0.0
      %690 = vmatprep.subr.mxu0 0.0
      %691 = vmatpush1.msra.mxu0 0.0
      %692 = vmatprep.subr.mxu0 0.0
      %693 = vmatpush1.msra.mxu0 0.0
      %694 = vmatprep.subr.mxu0 0.0
      %695 = vmatpush1.msra.mxu0 0.0
      %696 = vmatprep.subr.mxu0 0.0
      %697 = vmatpush1.msra.mxu0 0.0
      %698 = vmatprep.subr.mxu0 0.0
      %699 = vmatpush1.msra.mxu0 0.0
      %700 = vmatprep.subr.mxu0 %v668
      %701 = vmatpush1.msra.mxu0 %v665
      %702 = vmatprep.subr.mxu0 0.0
      %703 = vmatpush2.msra.mxu0 0.0
      %704 = vmatprep.subr.mxu0 0.0
      %705 = vmatpush2.msra.mxu0 0.0
      %706 = vmatprep.subr.mxu0 0.0
      %707 = vmatpush2.msra.mxu0 0.0
      %708 = vmatprep.subr.mxu0 0.0
      %709 = vmatpush2.msra.mxu0 0.0
      %710 = vmatprep.subr.mxu0 0.0
      %711 = vmatpush2.msra.mxu0 0.0
      %712 = vmatprep.subr.mxu0 0.0
      %713 = vmatpush2.msra.mxu0 0.0
      %714 = vmatprep.subr.mxu0 0.0
      %715 = vmatpush2.msra.mxu0 0.0
      %716 = vmatprep.subr.mxu0 0.0
      %717 = vmatpush2.msra.mxu0 0.0
      %718 = vmatprep.subr.mxu0 0.0
      %719 = vmatpush2.msra.mxu0 0.0
      %720 = vmatprep.subr.mxu0 0.0
      %721 = vmatpush2.msra.mxu0 0.0
      %722 = vmatprep.subr.mxu0 0.0
      %723 = vmatpush2.msra.mxu0 0.0
      %724 = vmatprep.subr.mxu0 0.0
      %725 = vmatpush2.msra.mxu0 0.0
      %726 = vmatprep.subr.mxu0 0.0
      %727 = vmatpush2.msra.mxu0 0.0
      %728 = vmatprep.subr.mxu0 0.0
      %729 = vmatpush2.msra.mxu0 0.0
      %730 = vmatprep.subr.mxu0 0.0
      %731 = vmatpush2.msra.mxu0 0.0
      %732 = vmatprep.subr.mxu0 0.0
      %733 = vmatpush2.msra.mxu0 0.0
      %734 = vmatprep.mubr.f32.mxu0 0.0
      %735 = vmatmul.mubr.f32.gmra.mxu0 %v662
      %v736 = vpop.f32.mrf.mxu0
      %v737 = vadd.f32 0.0, %v736
      %v738 = vpop.f32.mrf.mxu0
      %v739 = vadd.f32 0.0, %v738
      %740 = vdwg.mxu0
      %v741 = vadd.f32 %v650, %v737
      %v742 = vadd.f32 %v651, %v739
      %743 = vrot.lane.b32.xlu0 %v150, 113
      %v744 = vpop.permute.xlu0 %743
      %745 = vrot.lane.b32.xlu0 %v204, 113
      %v746 = vpop.permute.xlu0 %745
      %vm747 = vcmp.lt.s32.totalorder %v152, 113
      %v748 = vsel %vm747, %v744, %v746
      %v749 = vsel %vm747, %v746, %v744
      %vm750 = vmand %vm180, %vm182
      %vm751 = vmand %vm181, %vm183
      %v752 = vsel %vm750, %v748, 0.0
      %v753 = vsel %vm751, %v749, 0.0
      %v755 = vsel %vm226, %v198, 0
      %v758 = vsel %vm230, %v752, 0
      %v761 = vsel %vm230, %v753, 0
      %763 = vmatprep.subr.mxu0 0.0
      %764 = vmatpush1.msra.mxu0 0.0
      %765 = vmatprep.subr.mxu0 0.0
      %766 = vmatpush1.msra.mxu0 0.0
      %767 = vmatprep.subr.mxu0 0.0
      %768 = vmatpush1.msra.mxu0 0.0
      %769 = vmatprep.subr.mxu0 0.0
      %770 = vmatpush1.msra.mxu0 0.0
      %771 = vmatprep.subr.mxu0 0.0
      %772 = vmatpush1.msra.mxu0 0.0
      %773 = vmatprep.subr.mxu0 0.0
      %774 = vmatpush1.msra.mxu0 0.0
      %775 = vmatprep.subr.mxu0 0.0
      %776 = vmatpush1.msra.mxu0 0.0
      %777 = vmatprep.subr.mxu0 0.0
      %778 = vmatpush1.msra.mxu0 0.0
      %779 = vmatprep.subr.mxu0 0.0
      %780 = vmatpush1.msra.mxu0 0.0
      %781 = vmatprep.subr.mxu0 0.0
      %782 = vmatpush1.msra.mxu0 0.0
      %783 = vmatprep.subr.mxu0 0.0
      %784 = vmatpush1.msra.mxu0 0.0
      %785 = vmatprep.subr.mxu0 0.0
      %786 = vmatpush1.msra.mxu0 0.0
      %787 = vmatprep.subr.mxu0 0.0
      %788 = vmatpush1.msra.mxu0 0.0
      %789 = vmatprep.subr.mxu0 0.0
      %790 = vmatpush1.msra.mxu0 0.0
      %791 = vmatprep.subr.mxu0 0.0
      %792 = vmatpush1.msra.mxu0 0.0
      %793 = vmatprep.subr.mxu0 %v761
      %794 = vmatpush1.msra.mxu0 %v758
      %795 = vmatprep.subr.mxu0 0.0
      %796 = vmatpush2.msra.mxu0 0.0
      %797 = vmatprep.subr.mxu0 0.0
      %798 = vmatpush2.msra.mxu0 0.0
      %799 = vmatprep.subr.mxu0 0.0
      %800 = vmatpush2.msra.mxu0 0.0
      %801 = vmatprep.subr.mxu0 0.0
      %802 = vmatpush2.msra.mxu0 0.0
      %803 = vmatprep.subr.mxu0 0.0
      %804 = vmatpush2.msra.mxu0 0.0
      %805 = vmatprep.subr.mxu0 0.0
      %806 = vmatpush2.msra.mxu0 0.0
      %807 = vmatprep.subr.mxu0 0.0
      %808 = vmatpush2.msra.mxu0 0.0
      %809 = vmatprep.subr.mxu0 0.0
      %810 = vmatpush2.msra.mxu0 0.0
      %811 = vmatprep.subr.mxu0 0.0
      %812 = vmatpush2.msra.mxu0 0.0
      %813 = vmatprep.subr.mxu0 0.0
      %814 = vmatpush2.msra.mxu0 0.0
      %815 = vmatprep.subr.mxu0 0.0
      %816 = vmatpush2.msra.mxu0 0.0
      %817 = vmatprep.subr.mxu0 0.0
      %818 = vmatpush2.msra.mxu0 0.0
      %819 = vmatprep.subr.mxu0 0.0
      %820 = vmatpush2.msra.mxu0 0.0
      %821 = vmatprep.subr.mxu0 0.0
      %822 = vmatpush2.msra.mxu0 0.0
      %823 = vmatprep.subr.mxu0 0.0
      %824 = vmatpush2.msra.mxu0 0.0
      %825 = vmatprep.subr.mxu0 0.0
      %826 = vmatpush2.msra.mxu0 0.0
      %827 = vmatprep.mubr.f32.mxu0 0.0
      %828 = vmatmul.mubr.f32.gmra.mxu0 %v755
      %v829 = vpop.f32.mrf.mxu0
      %v830 = vadd.f32 0.0, %v829
      %v831 = vpop.f32.mrf.mxu0
      %v832 = vadd.f32 0.0, %v831
      %833 = vdwg.mxu0
      %v834 = vadd.f32 %v741, %v830
      %v835 = vadd.f32 %v742, %v832
      %836 = vrot.lane.b32.xlu0 %v150, 112
      %v837 = vpop.permute.xlu0 %836
      %838 = vrot.lane.b32.xlu0 %v204, 112
      %v839 = vpop.permute.xlu0 %838
      %vm840 = vcmp.lt.s32.totalorder %v152, 112
      %v841 = vsel %vm840, %v837, %v839
      %v842 = vsel %vm840, %v839, %v837
      %v843 = vsel %vm180, %v841, 0.0
      %v844 = vsel %vm181, %v842, 0.0
      %v846 = vsel %vm226, %v200, 0
      %v849 = vsel %vm230, %v843, 0
      %v852 = vsel %vm230, %v844, 0
      %854 = vmatprep.subr.mxu0 0.0
      %855 = vmatpush1.msra.mxu0 0.0
      %856 = vmatprep.subr.mxu0 0.0
      %857 = vmatpush1.msra.mxu0 0.0
      %858 = vmatprep.subr.mxu0 0.0
      %859 = vmatpush1.msra.mxu0 0.0
      %860 = vmatprep.subr.mxu0 0.0
      %861 = vmatpush1.msra.mxu0 0.0
      %862 = vmatprep.subr.mxu0 0.0
      %863 = vmatpush1.msra.mxu0 0.0
      %864 = vmatprep.subr.mxu0 0.0
      %865 = vmatpush1.msra.mxu0 0.0
      %866 = vmatprep.subr.mxu0 0.0
      %867 = vmatpush1.msra.mxu0 0.0
      %868 = vmatprep.subr.mxu0 0.0
      %869 = vmatpush1.msra.mxu0 0.0
      %870 = vmatprep.subr.mxu0 0.0
      %871 = vmatpush1.msra.mxu0 0.0
      %872 = vmatprep.subr.mxu0 0.0
      %873 = vmatpush1.msra.mxu0 0.0
      %874 = vmatprep.subr.mxu0 0.0
      %875 = vmatpush1.msra.mxu0 0.0
      %876 = vmatprep.subr.mxu0 0.0
      %877 = vmatpush1.msra.mxu0 0.0
      %878 = vmatprep.subr.mxu0 0.0
      %879 = vmatpush1.msra.mxu0 0.0
      %880 = vmatprep.subr.mxu0 0.0
      %881 = vmatpush1.msra.mxu0 0.0
      %882 = vmatprep.subr.mxu0 0.0
      %883 = vmatpush1.msra.mxu0 0.0
      %884 = vmatprep.subr.mxu0 %v852
      %885 = vmatpush1.msra.mxu0 %v849
      %886 = vmatprep.subr.mxu0 0.0
      %887 = vmatpush2.msra.mxu0 0.0
      %888 = vmatprep.subr.mxu0 0.0
      %889 = vmatpush2.msra.mxu0 0.0
      %890 = vmatprep.subr.mxu0 0.0
      %891 = vmatpush2.msra.mxu0 0.0
      %892 = vmatprep.subr.mxu0 0.0
      %893 = vmatpush2.msra.mxu0 0.0
      %894 = vmatprep.subr.mxu0 0.0
      %895 = vmatpush2.msra.mxu0 0.0
      %896 = vmatprep.subr.mxu0 0.0
      %897 = vmatpush2.msra.mxu0 0.0
      %898 = vmatprep.subr.mxu0 0.0
      %899 = vmatpush2.msra.mxu0 0.0
      %900 = vmatprep.subr.mxu0 0.0
      %901 = vmatpush2.msra.mxu0 0.0
      %902 = vmatprep.subr.mxu0 0.0
      %903 = vmatpush2.msra.mxu0 0.0
      %904 = vmatprep.subr.mxu0 0.0
      %905 = vmatpush2.msra.mxu0 0.0
      %906 = vmatprep.subr.mxu0 0.0
      %907 = vmatpush2.msra.mxu0 0.0
      %908 = vmatprep.subr.mxu0 0.0
      %909 = vmatpush2.msra.mxu0 0.0
      %910 = vmatprep.subr.mxu0 0.0
      %911 = vmatpush2.msra.mxu0 0.0
      %912 = vmatprep.subr.mxu0 0.0
      %913 = vmatpush2.msra.mxu0 0.0
      %914 = vmatprep.subr.mxu0 0.0
      %915 = vmatpush2.msra.mxu0 0.0
      %916 = vmatprep.subr.mxu0 0.0
      %917 = vmatpush2.msra.mxu0 0.0
      %918 = vmatprep.mubr.f32.mxu0 0.0
      %919 = vmatmul.mubr.f32.gmra.mxu0 %v846
      %v920 = vpop.f32.mrf.mxu0
      %v921 = vadd.f32 0.0, %v920
      %v922 = vpop.f32.mrf.mxu0
      %v923 = vadd.f32 0.0, %v922
      %924 = vdwg.mxu0
      %v925 = vadd.f32 %v834, %v921
      %v926 = vadd.f32 %v835, %v923
      %927 = vrot.lane.b32.xlu0 %v150, 111
      %v928 = vpop.permute.xlu0 %927
      %929 = vrot.lane.b32.xlu0 %v204, 111
      %v930 = vpop.permute.xlu0 %929
      %vm931 = vcmp.lt.s32.totalorder %v152, 111
      %v932 = vsel %vm931, %v928, %v930
      %v933 = vsel %vm931, %v930, %v928
      %vm934 = vmand %vm180, %vm184
      %vm935 = vmand %vm181, %vm185
      %v936 = vsel %vm934, %v932, 0.0
      %v937 = vsel %vm935, %v933, 0.0
      %v939 = vsel %vm226, %v202, 0
      %v942 = vsel %vm230, %v936, 0
      %v945 = vsel %vm230, %v937, 0
      %947 = vmatprep.subr.mxu0 0.0
      %948 = vmatpush1.msra.mxu0 0.0
      %949 = vmatprep.subr.mxu0 0.0
      %950 = vmatpush1.msra.mxu0 0.0
      %951 = vmatprep.subr.mxu0 0.0
      %952 = vmatpush1.msra.mxu0 0.0
      %953 = vmatprep.subr.mxu0 0.0
      %954 = vmatpush1.msra.mxu0 0.0
      %955 = vmatprep.subr.mxu0 0.0
      %956 = vmatpush1.msra.mxu0 0.0
      %957 = vmatprep.subr.mxu0 0.0
      %958 = vmatpush1.msra.mxu0 0.0
      %959 = vmatprep.subr.mxu0 0.0
      %960 = vmatpush1.msra.mxu0 0.0
      %961 = vmatprep.subr.mxu0 0.0
      %962 = vmatpush1.msra.mxu0 0.0
      %963 = vmatprep.subr.mxu0 0.0
      %964 = vmatpush1.msra.mxu0 0.0
      %965 = vmatprep.subr.mxu0 0.0
      %966 = vmatpush1.msra.mxu0 0.0
      %967 = vmatprep.subr.mxu0 0.0
      %968 = vmatpush1.msra.mxu0 0.0
      %969 = vmatprep.subr.mxu0 0.0
      %970 = vmatpush1.msra.mxu0 0.0
      %971 = vmatprep.subr.mxu0 0.0
      %972 = vmatpush1.msra.mxu0 0.0
      %973 = vmatprep.subr.mxu0 0.0
      %974 = vmatpush1.msra.mxu0 0.0
      %975 = vmatprep.subr.mxu0 0.0
      %976 = vmatpush1.msra.mxu0 0.0
      %977 = vmatprep.subr.mxu0 %v945
      %978 = vmatpush1.msra.mxu0 %v942
      %979 = vmatprep.subr.mxu0 0.0
      %980 = vmatpush2.msra.mxu0 0.0
      %981 = vmatprep.subr.mxu0 0.0
      %982 = vmatpush2.msra.mxu0 0.0
      %983 = vmatprep.subr.mxu0 0.0
      %984 = vmatpush2.msra.mxu0 0.0
      %985 = vmatprep.subr.mxu0 0.0
      %986 = vmatpush2.msra.mxu0 0.0
      %987 = vmatprep.subr.mxu0 0.0
      %988 = vmatpush2.msra.mxu0 0.0
      %989 = vmatprep.subr.mxu0 0.0
      %990 = vmatpush2.msra.mxu0 0.0
      %991 = vmatprep.subr.mxu0 0.0
      %992 = vmatpush2.msra.mxu0 0.0
      %993 = vmatprep.subr.mxu0 0.0
      %994 = vmatpush2.msra.mxu0 0.0
      %995 = vmatprep.subr.mxu0 0.0
      %996 = vmatpush2.msra.mxu0 0.0
      %997 = vmatprep.subr.mxu0 0.0
      %998 = vmatpush2.msra.mxu0 0.0
      %999 = vmatprep.subr.mxu0 0.0
      %1000 = vmatpush2.msra.mxu0 0.0
      %1001 = vmatprep.subr.mxu0 0.0
      %1002 = vmatpush2.msra.mxu0 0.0
      %1003 = vmatprep.subr.mxu0 0.0
      %1004 = vmatpush2.msra.mxu0 0.0
      %1005 = vmatprep.subr.mxu0 0.0
      %1006 = vmatpush2.msra.mxu0 0.0
      %1007 = vmatprep.subr.mxu0 0.0
      %1008 = vmatpush2.msra.mxu0 0.0
      %1009 = vmatprep.subr.mxu0 0.0
      %1010 = vmatpush2.msra.mxu0 0.0
      %1011 = vmatprep.mubr.f32.mxu0 0.0
      %1012 = vmatmul.mubr.f32.gmra.mxu0 %v939
      %v1013 = vpop.f32.mrf.mxu0
      %v1014 = vadd.f32 0.0, %v1013
      %v1015 = vpop.f32.mrf.mxu0
      %v1016 = vadd.f32 0.0, %v1015
      %1017 = vdwg.mxu0
      %v1018 = vadd.f32 %v925, %v1014
      %v1019 = vadd.f32 %v926, %v1016
      %v1022 = vrot.slane %v1018, 4
      %v1023 = vrot.slane %v1019, 4
      %1026 = vst [vmem:[%s143] sm:$0xf0] %v1022
      %1027 = vst [vmem:[%s143 + $0x8] sm:$0xf0] %v1023
      %1028 = vst [vmem:[%s143 + $0x10] sm:$0xf] %v1022
      %1029 = vst [vmem:[%s143 + $0x18] sm:$0xf] %v1023
      %p1030 = scmp.lt.s32.totalorder %s13, 1
      %s1031 = scalar_select %p1030, %s13, 1
      %s1032 = smul.addr %s1031, 4
      %s1033 = smul.addr %s1032, 8
      %s1034 = scalar_lea.vmem %s2, %s1033
      // Predicated region
      $region29: #{tpu_custom_call.1} parent=27 // pred_check
        %p1035 = pneg %p78
      $region30: #{tpu_custom_call.1} parent=27 // pred_check_branch
        %1037 = sbr.rel (%p1035) target = $region32
      $region31: #{tpu_custom_call.1} parent=27 // pred_region
        _
      $region32: #{tpu_custom_call.1} parent=27 // pred_fallthru
        _
    $region28: #{tpu_custom_call.1} parent=5 // pred_fallthru
      _
    %p1038 = scmp.le.s32.totalorder 2, %s8
    // Predicated region
    $region33: #{tpu_custom_call.1} parent=5 // pred_check
      %p1039 = pneg %p1038
    $region34: #{tpu_custom_call.1} parent=5 // pred_check_branch
      %1041 = sbr.rel (%p1039) target = $region36
    $region35: #{tpu_custom_call.1} parent=5 // pred_region
      %s1042 = ssub.s32 %s8, 2
      // Predicated region
      $region37: #{tpu_custom_call.1} parent=35 // pred_check
        %p1043 = pneg %p84
      $region38: #{tpu_custom_call.1} parent=35 // pred_check_branch
        %1045 = sbr.rel (%p1043) target = $region40
      $region39: #{tpu_custom_call.1} parent=35 // pred_region
        %p1046 = scmp.lt.s32.totalorder %s14, 1
        %s1047 = scalar_select %p1046, %s14, 1
        %s1048 = smul.addr %s1047, 4
        %s1049 = smul.addr %s1048, 8
        %s1050 = scalar_lea.vmem %s2, %s1049
      $region40: #{tpu_custom_call.1} parent=35 // pred_fallthru
        _
    $region36: #{tpu_custom_call.1} parent=5 // pred_fallthru
      _
  $region6: #{tpu_custom_call.1} parent=0 // loop_footer
    %s12 = sadd.s32 1, %s8
  $region7: #{tpu_custom_call.1} parent=0 // loop_footer_branch
    %7 = sbr.rel target = $region3
  $region8: #{tpu_custom_call.1} parent=0 // loop_exit
    _

</llo_original>
